<compile_context>
chip_gen: v5e
topology: v5e:2x2
jax: 0.10.0
libtpu: 0.0.40
codegen_flags: <defaults>
</compile_context>

<pallas_src>
import math

import numpy as np
import jax
import jax.numpy as jnp
from jax.experimental import pallas as pl
from jax.experimental.pallas import tpu as pltpu


# ----------------------------------------------------------------------------
# Deterministic parameter initialization (mirrors S4NDLayer.__init__ shapes).
# ----------------------------------------------------------------------------
def _make_hippo(N: int) -> np.ndarray:
    def idx2value(r, c):
        if r > c:
            return math.sqrt(2 * r + 1) * math.sqrt(2 * c + 1)
        if r == c:
            return float(r + 1)
        return 0.0

    h = np.zeros((N, N))
    for i in range(1, N + 1):
        for j in range(1, N + 1):
            h[i - 1, j - 1] = idx2value(i, j)
    return h


def _make_nplr_hippo(N: int):
    nhippo = -_make_hippo(N)
    p = 0.5 * np.sqrt(2 * np.arange(1, N + 1) - 1.0)
    q = 2 * p
    S = nhippo + p[:, None] * q[None, :]
    lam, V = np.linalg.eig(S)
    return lam, p, q, V


def _make_p_q_lambda(n: int):
    lam, p, q, V = _make_nplr_hippo(n)
    Vc = V.conj().T
    p = Vc @ p
    q = Vc @ q.conj()
    return p, q, lam


def _log_step_initializer(t, dt_min=0.001, dt_max=0.1):
    return t * (math.log(dt_max) - math.log(dt_min)) + math.log(dt_min)


def _make_omega_l(l_max: int):
    # matches torch.arange(l_max).type(complex64).mul(2j*pi/l_max).exp()
    return jnp.exp(jnp.arange(l_max) * (2j * jnp.pi / l_max)).astype(jnp.complex64)


def init_s4nd_params(key, d_model: int, n: int, seq_shape: tuple):
    dim_params = []
    for L in seq_shape:
        p, q, lam = _make_p_q_lambda(n)
        key, kbr, kbi, kcr, kci, ks = jax.random.split(key, 6)
        # xavier_normal_ on a complex (d_model, n) tensor
        std = math.sqrt(2.0 / (d_model + n)) / math.sqrt(2.0)
        B = (jax.random.normal(kbr, (d_model, n)) +
             1j * jax.random.normal(kbi, (d_model, n))) * std
        Ct = (jax.random.normal(kcr, (d_model, n)) +
              1j * jax.random.normal(kci, (d_model, n))) * std
        log_step = _log_step_initializer(
            jax.random.uniform(ks, (d_model,), jnp.float32))
        dim_params.append(dict(
            p=jnp.asarray(p, jnp.complex64),                      # (n,)
            q=jnp.asarray(q, jnp.complex64),                      # (n,)
            lambda_=jnp.asarray(lam, jnp.complex64)[None, None],  # (1, 1, n)
            omega_l=_make_omega_l(L),                             # (L,)
            ifft_order=jnp.asarray(
                [x if x == 0 else L - x for x in range(L)], jnp.int32),
            B=B.astype(jnp.complex64),                            # (d_model, n)
            Ct=Ct.astype(jnp.complex64),                          # (d_model, n)
            log_step=log_step,                                    # (d_model,)
        ))
    D = jnp.ones((1,) * (len(seq_shape) + 1) + (d_model,), jnp.float32)
    return dim_params, D


# ----------------------------------------------------------------------------
# 1-D kernel (K) construction - plain JAX "parameter setup" (complex math + ifft).
# ----------------------------------------------------------------------------
def _cauchy_dot(v, denom):
    if v.ndim == 1:
        v = v[None, None, :]
    elif v.ndim == 2:
        v = v[:, None, :]
    return (v / denom).sum(-1)


def _compute_roots(p, q, lam, omega_l, B, Ct, log_step):
    a0, a1 = jnp.conj(Ct), jnp.conj(q)
    b0, b1 = B, p
    step = jnp.exp(log_step)
    g = jnp.outer(2.0 / step, (1.0 - omega_l) / (1.0 + omega_l))   # (d_model, L)
    c = 2.0 / (1.0 + omega_l)                                      # (L,)
    denom = g[..., None] - lam                                     # (d_model, L, n)
    k00 = _cauchy_dot(a0 * b0, denom)
    k01 = _cauchy_dot(a0 * b1, denom)
    k10 = _cauchy_dot(a1 * b0, denom)
    k11 = _cauchy_dot(a1 * b1, denom)
    return c * (k00 - k01 * (1.0 / (1.0 + k11)) * k10)             # (d_model, L)


def _compute_kernel_1d(dp):
    at_roots = _compute_roots(dp['p'], dp['q'], dp['lambda_'], dp['omega_l'],
                              dp['B'], dp['Ct'], dp['log_step'])
    out = jnp.fft.ifft(at_roots, axis=-1)
    conv = jnp.real(out[:, dp['ifft_order']])                      # (d_model, L)
    return conv[None]                                              # (1, d_model, L)


def _causal_toeplitz_1d(Kc):
    """Kc: (d_model, L) -> T: (d_model, L, L) with T[d,i,a] = Kc[d,i-a] if a<=i else 0."""
    L = Kc.shape[-1]
    idx = jnp.arange(L)
    delta = idx[:, None] - idx[None, :]                            # [i, a] -> i - a
    return jnp.where((delta >= 0)[None], Kc[:, jnp.maximum(delta, 0)], 0.0)


# ----------------------------------------------------------------------------
# Operator precompute (parameter-only; hoisted off the data path).
# ----------------------------------------------------------------------------
def build_s4nd_operators(dim_params, D_param):
    """Returns
      T0       : (D, H, H)     f32  T0[d, i, a]        = K0[d, i-a]  (a <= i)
      T1B      : (W*D, W*D)    f32  T1B[c*D+d, j*D+d]  = K1[d, j-c]  (c <= j),
                                    zero off the per-channel diagonal blocks
      chan_mask: (D, 1, W*D)   f32  chan_mask[d,0,j*D+e] = (e == d)
      skip_vec : (1, W*D)      f32  skip_vec[0, j*D+d]   = D_param[d]
    """
    # TODO(synk): the kernel-construction complex Cauchy dot + ifft has no
    #             Pallas primitive; it stays in plain JAX (parameter-sized only).
    K0 = _compute_kernel_1d(dim_params[0])[0]                      # (D, H)
    K1 = _compute_kernel_1d(dim_params[1])[0]                      # (D, W)
    d_model, W = K1.shape
    T0 = _causal_toeplitz_1d(K0.astype(jnp.float32))               # (D, H, H)
    # T1t[d, c, j] = K1[d, j - c] for c <= j (transposed causal Toeplitz).
    T1t = jnp.swapaxes(_causal_toeplitz_1d(K1.astype(jnp.float32)), 1, 2)
    eye_d = jnp.eye(d_model, dtype=jnp.float32)
    # Channel-block-diagonal right factor acting on the merged (w, d) columns.
    T1B = jnp.einsum('dcj,de->cdje', T1t, eye_d).reshape(
        W * d_model, W * d_model)
    chan_mask = jnp.tile(eye_d, (1, W)).reshape(d_model, 1, W * d_model)
    skip_vec = jnp.tile(D_param.reshape(1, d_model).astype(jnp.float32), (1, W))
    return T0, T1B, chan_mask, skip_vec


# ----------------------------------------------------------------------------
# Pallas kernel: separable causal 2-D conv, channels-last, zero relayouts.
# ----------------------------------------------------------------------------
def _make_s4nd_kernel(d_model: int):
    def kernel(u_ref, t1b_ref, t0_ref, mask_ref, skip_ref, o_ref):
        """One batch element (grid axis b, squeezed by BlockSpec).

        u_ref   : (H, W*D)    native dtype  channels-last slab, (w,d) merged
        t1b_ref : (W*D, W*D)  f32           channel-block-diag W-conv Toeplitz
        t0_ref  : (D, H, H)   f32           per-channel H-conv Toeplitz
        mask_ref: (D, 1, W*D) f32           per-channel column selectors
        skip_ref: (1, W*D)    f32           per-channel skip scale D[d]
        o_ref   : (H, W*D)    u.dtype
        """
        u = u_ref[...].astype(jnp.float32)
        # Causal W-conv for all channels at once: one 2-D MXU matmul,
        # z[a, j*D+d] = sum_{c<=j} u[a, c*D+d] * K1[d, j-c].
        z = jnp.dot(u, t1b_ref[...], preferred_element_type=jnp.float32)
        # Skip connection D[d] * u, fused in f32 (VPU broadcast over rows).
        acc = skip_ref[...] * u
        # Causal H-conv: per-channel left Toeplitz matmul restricted to that
        # channel's columns.  d_model is small and static -> unrolled loop.
        for d in range(d_model):
            yd = jnp.dot(t0_ref[d], z, preferred_element_type=jnp.float32)
            acc = acc + yd * mask_ref[d]
        o_ref[...] = acc.astype(o_ref.dtype)
    return kernel


def s4nd_apply(u, T0, T1B, chan_mask, skip_vec):
    """u: [B, H, W, d_model] -> y: [B, H, W, d_model]; channels-last throughout."""
    Bsz, H, W, d_model = u.shape
    WD = W * d_model
    # Free reshape (merges contiguous trailing dims) -- no HBM relayout pass.
    u2 = u.reshape(Bsz, H, WD)

    y2 = pl.pallas_call(
        _make_s4nd_kernel(d_model),
        out_shape=jax.ShapeDtypeStruct((Bsz, H, WD), u.dtype),
        grid=(Bsz,),
        in_specs=[
            pl.BlockSpec((None, H, WD), lambda b: (b, 0, 0)),       # u slab
            pl.BlockSpec((WD, WD), lambda b: (0, 0)),               # T1B
            pl.BlockSpec((d_model, H, H), lambda b: (0, 0, 0)),     # T0 stack
            pl.BlockSpec((d_model, 1, WD), lambda b: (0, 0, 0)),    # channel masks
            pl.BlockSpec((1, WD), lambda b: (0, 0)),                # skip scales
        ],
        out_specs=pl.BlockSpec((None, H, WD), lambda b: (b, 0, 0)),
        compiler_params=pltpu.CompilerParams(
            dimension_semantics=("parallel",),        # >=2 extent -> v7x megacore
            vmem_limit_bytes=32 * 1024 * 1024),
    )(u2, T1B, T0, chan_mask, skip_vec)

    # Free reshape back (splits the trailing dim) -- no HBM relayout pass.
    return y2.reshape(Bsz, H, W, d_model)


def s4nd_forward(u, dim_params, D_param):
    """Full forward (operator construction + Pallas conv); mirrors S4NDLayer.forward."""
    T0, T1B, chan_mask, skip_vec = build_s4nd_operators(dim_params, D_param)
    return s4nd_apply(u, T0, T1B, chan_mask, skip_vec)


# ----------------------------------------------------------------------------
if __name__ == "__main__":
    d_model, n = 4, 8
    seq_shape = (16, 16)        # (HEIGHT, WIDTH)
    batch = 2

    key = jax.random.PRNGKey(0)
    key, k_u, k_p = jax.random.split(key, 3)
    dim_params, D_param = init_s4nd_params(k_p, d_model, n, seq_shape)
    u = jax.random.normal(k_u, (batch,) + seq_shape + (d_model,), jnp.float32)

    y = jax.jit(s4nd_forward)(u, dim_params, D_param)
    jax.block_until_ready(y)
    assert y.shape == u.shape and y.dtype == u.dtype

    # Exact-semantics reference: the module's rfft2/irfft2 non-circular conv + D*u.
    H, W = seq_shape
    K0 = _compute_kernel_1d(dim_params[0])
    K1 = _compute_kernel_1d(dim_params[1])
    K = jnp.einsum('bhi,bhj->bhij', K0, K1)[0]                     # (d, H, W)
    u_pad = jnp.pad(u.astype(jnp.float32), ((0, 0), (0, H), (0, W), (0, 0)))
    K_pad = jnp.pad(K.astype(jnp.float32), ((0, 0), (0, H), (0, W)))
    ud = jnp.fft.rfft2(u_pad, axes=(1, 2))                         # (B, 2H, W+1, d)
    Kd = jnp.fft.rfft2(K_pad, axes=(-2, -1))                       # (d, 2H, W+1)
    conv = jnp.fft.irfft2(jnp.transpose(ud, (0, 3, 1, 2)) * Kd,
                          axes=(-2, -1))[..., :H, :W]              # (B, d, H, W)
    y_ref = jnp.transpose(conv, (0, 2, 3, 1)) + D_param * u

    # All-f32 operands now (no bf16 weight/activation/intermediate quantization),
    # so the tolerance is tightened vs the previous bf16 version.
    scale = float(jnp.max(jnp.abs(y_ref))) + 1e-6
    np.testing.assert_allclose(np.asarray(y), np.asarray(y_ref),
                               rtol=1e-2, atol=1e-2 * scale)
    print("KERNEL_OK")
</pallas_src>

<mosaic_0001>
module attributes {stable_mosaic.version = 11 : i64} {
  func.func @kernel(%arg0: i32, %arg1: memref<1x16x64xf32, #tpu.memory_space<vmem>>, %arg2: memref<64x64xf32, #tpu.memory_space<vmem>>, %arg3: memref<4x16x16xf32, #tpu.memory_space<vmem>>, %arg4: memref<4x1x64xf32, #tpu.memory_space<vmem>>, %arg5: memref<1x64xf32, #tpu.memory_space<vmem>>, %arg6: memref<1x16x64xf32, #tpu.memory_space<vmem>>) attributes {dimension_semantics = [#tpu.dimension_semantics<parallel>], iteration_bounds = array<i64: 2>, scalar_prefetch = 0 : i64, scratch_operands = 0 : i64, tpu.core_type = #tpu.core_type<tc>, window_params = [{transform_indices = @transform_0, window_bounds = array<i64: 1, 16, 64>}, {pipeline_mode = #tpu.pipeline_mode<synchronous>, transform_indices = @transform_1, window_bounds = array<i64: 64, 64>}, {pipeline_mode = #tpu.pipeline_mode<synchronous>, transform_indices = @transform_2, window_bounds = array<i64: 4, 16, 16>}, {pipeline_mode = #tpu.pipeline_mode<synchronous>, transform_indices = @transform_3, window_bounds = array<i64: 4, 1, 64>}, {pipeline_mode = #tpu.pipeline_mode<synchronous>, transform_indices = @transform_4, window_bounds = array<i64: 1, 64>}, {transform_indices = @transform_5, window_bounds = array<i64: 1, 16, 64>}]} {
    %c0 = arith.constant 0 : index
    %c0_0 = arith.constant 0 : index
    %c0_1 = arith.constant 0 : index
    %0 = vector.load %arg1[%c0, %c0_0, %c0_1] : memref<1x16x64xf32, #tpu.memory_space<vmem>>, vector<1x16x64xf32>
    %1 = vector.shape_cast %0 : vector<1x16x64xf32> to vector<16x64xf32>
    %c0_2 = arith.constant 0 : index
    %c0_3 = arith.constant 0 : index
    %2 = vector.load %arg2[%c0_2, %c0_3] : memref<64x64xf32, #tpu.memory_space<vmem>>, vector<64x64xf32>
    %cst = arith.constant dense<0.000000e+00> : vector<16x64xf32>
    %3 = tpu.matmul %1, %2, %cst {dimension_numbers = #tpu.dot_dimension_numbers<[1], [0], [0], [1], [0, 0, 1, 1], [], []>} : vector<16x64xf32>, vector<64x64xf32>, vector<16x64xf32> -> vector<16x64xf32>
    %c0_4 = arith.constant 0 : index
    %c0_5 = arith.constant 0 : index
    %4 = vector.load %arg5[%c0_4, %c0_5] : memref<1x64xf32, #tpu.memory_space<vmem>>, vector<1x64xf32>
    %5 = vector.broadcast %4 : vector<1x64xf32> to vector<16x64xf32>
    %6 = arith.mulf %5, %1 : vector<16x64xf32>
    %c0_6 = arith.constant 0 : index
    %c0_7 = arith.constant 0 : index
    %c0_8 = arith.constant 0 : index
    %7 = vector.load %arg3[%c0_6, %c0_7, %c0_8] : memref<4x16x16xf32, #tpu.memory_space<vmem>>, vector<1x16x16xf32>
    %8 = vector.shape_cast %7 : vector<1x16x16xf32> to vector<16x16xf32>
    %cst_9 = arith.constant dense<0.000000e+00> : vector<16x64xf32>
    %9 = tpu.matmul %8, %3, %cst_9 {dimension_numbers = #tpu.dot_dimension_numbers<[1], [0], [0], [1], [0, 0, 1, 1], [], []>} : vector<16x16xf32>, vector<16x64xf32>, vector<16x64xf32> -> vector<16x64xf32>
    %c0_10 = arith.constant 0 : index
    %c0_11 = arith.constant 0 : index
    %c0_12 = arith.constant 0 : index
    %10 = vector.load %arg4[%c0_10, %c0_11, %c0_12] : memref<4x1x64xf32, #tpu.memory_space<vmem>>, vector<1x1x64xf32>
    %11 = vector.shape_cast %10 : vector<1x1x64xf32> to vector<1x64xf32>
    %12 = vector.broadcast %11 : vector<1x64xf32> to vector<16x64xf32>
    %13 = arith.mulf %9, %12 : vector<16x64xf32>
    %14 = arith.addf %6, %13 : vector<16x64xf32>
    %c1 = arith.constant 1 : index
    %c0_13 = arith.constant 0 : index
    %c0_14 = arith.constant 0 : index
    %15 = vector.load %arg3[%c1, %c0_13, %c0_14] : memref<4x16x16xf32, #tpu.memory_space<vmem>>, vector<1x16x16xf32>
    %16 = vector.shape_cast %15 : vector<1x16x16xf32> to vector<16x16xf32>
    %cst_15 = arith.constant dense<0.000000e+00> : vector<16x64xf32>
    %17 = tpu.matmul %16, %3, %cst_15 {dimension_numbers = #tpu.dot_dimension_numbers<[1], [0], [0], [1], [0, 0, 1, 1], [], []>} : vector<16x16xf32>, vector<16x64xf32>, vector<16x64xf32> -> vector<16x64xf32>
    %c1_16 = arith.constant 1 : index
    %c0_17 = arith.constant 0 : index
    %c0_18 = arith.constant 0 : index
    %18 = vector.load %arg4[%c1_16, %c0_17, %c0_18] : memref<4x1x64xf32, #tpu.memory_space<vmem>>, vector<1x1x64xf32>
    %19 = vector.shape_cast %18 : vector<1x1x64xf32> to vector<1x64xf32>
    %20 = vector.broadcast %19 : vector<1x64xf32> to vector<16x64xf32>
    %21 = arith.mulf %17, %20 : vector<16x64xf32>
    %22 = arith.addf %14, %21 : vector<16x64xf32>
    %c2 = arith.constant 2 : index
    %c0_19 = arith.constant 0 : index
    %c0_20 = arith.constant 0 : index
    %23 = vector.load %arg3[%c2, %c0_19, %c0_20] : memref<4x16x16xf32, #tpu.memory_space<vmem>>, vector<1x16x16xf32>
    %24 = vector.shape_cast %23 : vector<1x16x16xf32> to vector<16x16xf32>
    %cst_21 = arith.constant dense<0.000000e+00> : vector<16x64xf32>
    %25 = tpu.matmul %24, %3, %cst_21 {dimension_numbers = #tpu.dot_dimension_numbers<[1], [0], [0], [1], [0, 0, 1, 1], [], []>} : vector<16x16xf32>, vector<16x64xf32>, vector<16x64xf32> -> vector<16x64xf32>
    %c2_22 = arith.constant 2 : index
    %c0_23 = arith.constant 0 : index
    %c0_24 = arith.constant 0 : index
    %26 = vector.load %arg4[%c2_22, %c0_23, %c0_24] : memref<4x1x64xf32, #tpu.memory_space<vmem>>, vector<1x1x64xf32>
    %27 = vector.shape_cast %26 : vector<1x1x64xf32> to vector<1x64xf32>
    %28 = vector.broadcast %27 : vector<1x64xf32> to vector<16x64xf32>
    %29 = arith.mulf %25, %28 : vector<16x64xf32>
    %30 = arith.addf %22, %29 : vector<16x64xf32>
    %c3 = arith.constant 3 : index
    %c0_25 = arith.constant 0 : index
    %c0_26 = arith.constant 0 : index
    %31 = vector.load %arg3[%c3, %c0_25, %c0_26] : memref<4x16x16xf32, #tpu.memory_space<vmem>>, vector<1x16x16xf32>
    %32 = vector.shape_cast %31 : vector<1x16x16xf32> to vector<16x16xf32>
    %cst_27 = arith.constant dense<0.000000e+00> : vector<16x64xf32>
    %33 = tpu.matmul %32, %3, %cst_27 {dimension_numbers = #tpu.dot_dimension_numbers<[1], [0], [0], [1], [0, 0, 1, 1], [], []>} : vector<16x16xf32>, vector<16x64xf32>, vector<16x64xf32> -> vector<16x64xf32>
    %c3_28 = arith.constant 3 : index
    %c0_29 = arith.constant 0 : index
    %c0_30 = arith.constant 0 : index
    %34 = vector.load %arg4[%c3_28, %c0_29, %c0_30] : memref<4x1x64xf32, #tpu.memory_space<vmem>>, vector<1x1x64xf32>
    %35 = vector.shape_cast %34 : vector<1x1x64xf32> to vector<1x64xf32>
    %36 = vector.broadcast %35 : vector<1x64xf32> to vector<16x64xf32>
    %37 = arith.mulf %33, %36 : vector<16x64xf32>
    %38 = arith.addf %30, %37 : vector<16x64xf32>
    %c0_31 = arith.constant 0 : index
    %c0_32 = arith.constant 0 : index
    %c0_33 = arith.constant 0 : index
    %39 = vector.load %arg6[%c0_31, %c0_32, %c0_33] : memref<1x16x64xf32, #tpu.memory_space<vmem>>, vector<1x16x64xf32>
    %40 = vector.shape_cast %39 : vector<1x16x64xf32> to vector<16x64xf32>
    %41 = vector.shape_cast %38 : vector<16x64xf32> to vector<1x16x64xf32>
    tpu.vector_store %arg6[%c0_31, %c0_32, %c0_33], %41 {strides = array<i32>} : memref<1x16x64xf32, #tpu.memory_space<vmem>>, vector<1x16x64xf32>,
    return
  }
  func.func @transform_0(%arg0: i32) -> (i32, i32, i32) {
    %c0_i32 = arith.constant 0 : i32
    %c0_i32_0 = arith.constant 0 : i32
    %c0_i32_1 = arith.constant 0 : i32
    return %arg0, %c0_i32, %c0_i32_0 : i32, i32, i32
  }
  func.func @transform_1(%arg0: i32) -> (i32, i32) {
    %c0_i32 = arith.constant 0 : i32
    %c0_i32_0 = arith.constant 0 : i32
    %c0_i32_1 = arith.constant 0 : i32
    return %c0_i32, %c0_i32_0 : i32, i32
  }
  func.func @transform_2(%arg0: i32) -> (i32, i32, i32) {
    %c0_i32 = arith.constant 0 : i32
    %c0_i32_0 = arith.constant 0 : i32
    %c0_i32_1 = arith.constant 0 : i32
    %c0_i32_2 = arith.constant 0 : i32
    return %c0_i32, %c0_i32_0, %c0_i32_1 : i32, i32, i32
  }
  func.func @transform_3(%arg0: i32) -> (i32, i32, i32) {
    %c0_i32 = arith.constant 0 : i32
    %c0_i32_0 = arith.constant 0 : i32
    %c0_i32_1 = arith.constant 0 : i32
    %c0_i32_2 = arith.constant 0 : i32
    return %c0_i32, %c0_i32_0, %c0_i32_1 : i32, i32, i32
  }
  func.func @transform_4(%arg0: i32) -> (i32, i32) {
    %c0_i32 = arith.constant 0 : i32
    %c0_i32_0 = arith.constant 0 : i32
    %c0_i32_1 = arith.constant 0 : i32
    return %c0_i32, %c0_i32_0 : i32, i32
  }
  func.func @transform_5(%arg0: i32) -> (i32, i32, i32) {
    %c0_i32 = arith.constant 0 : i32
    %c0_i32_0 = arith.constant 0 : i32
    %c0_i32_1 = arith.constant 0 : i32
    return %arg0, %c0_i32, %c0_i32_0 : i32, i32, i32
  }
}

</mosaic_0001>

<llo_original>
// kernel: custom-call.3
$region0: #{custom-call.3}
  %s0 = inlined_call_operand.hbm [shape: c64[4,8], index: 0, kind: input, shape index: {}]
  %s1 = inlined_call_operand.vmem [shape: f32[4,8], index: 1, kind: output, shape index: {}]
  %s2 = scalar_lea.hbm %s0, 4
  $region1: #{custom-call.3} parent=0
    #allocation0 [shape = 's32[1]{0}', space=sflag, size = 0x4, scoped, tag = 'scoped memory for custom-call.3']
    %3 = vsyncpa [#allocation0], 0
    %s5 = sshll.u32 %s2, 4
    %s6 = int_to_ptr.hbm [resolvable:$true] %s5
    %s7 = sshll.u32 %s1, 4
    %s8 = int_to_ptr.vmem [resolvable:$true] %s7
    %10 = dma.hbm_to_vmem [thread:$0]  %s6, 64, %s8, [#allocation0]
    %12 = dma.done [#allocation0], 64
    %13 = vsyncpa [#allocation0], 1

// kernel: custom-call.9
$region0: #{custom-call.9}
  %s0 = inlined_call_operand.hbm [shape: c64[8], index: 0, kind: input, shape index: {}]
  %s1 = inlined_call_operand.vmem [shape: f32[8], index: 1, kind: output, shape index: {}]
  %s2 = scalar_lea.hbm %s0, 1
  $region1: #{custom-call.9} parent=0
    #allocation0 [shape = 's32[1]{0}', space=sflag, size = 0x4, scoped, tag = 'scoped memory for custom-call.9']
    %3 = vsyncpa [#allocation0], 0
    %s5 = sshll.u32 %s2, 4
    %s6 = int_to_ptr.hbm [resolvable:$true] %s5
    %s7 = sshll.u32 %s1, 4
    %s8 = int_to_ptr.vmem [resolvable:$true] %s7
    %10 = dma.hbm_to_vmem [thread:$0]  %s6, 16, %s8, [#allocation0]
    %12 = dma.done [#allocation0], 16
    %13 = vsyncpa [#allocation0], 1

// kernel: custom-call.2
$region0: #{custom-call.2}
  %s0 = inlined_call_operand.hbm [shape: c64[4,8], index: 0, kind: input, shape index: {}]
  %s1 = inlined_call_operand.vmem [shape: f32[4,8], index: 1, kind: output, shape index: {}]
  $region1: #{custom-call.2} parent=0
    #allocation0 [shape = 's32[1]{0}', space=sflag, size = 0x4, scoped, tag = 'scoped memory for custom-call.2']
    %2 = vsyncpa [#allocation0], 0
    %s4 = sshll.u32 %s0, 4
    %s5 = int_to_ptr.hbm [resolvable:$true] %s4
    %s6 = sshll.u32 %s1, 4
    %s7 = int_to_ptr.vmem [resolvable:$true] %s6
    %9 = dma.hbm_to_vmem [thread:$0]  %s5, 64, %s7, [#allocation0]
    %11 = dma.done [#allocation0], 64
    %12 = vsyncpa [#allocation0], 1

// kernel: custom-call.8
$region0: #{custom-call.8}
  %s0 = inlined_call_operand.hbm [shape: c64[8], index: 0, kind: input, shape index: {}]
  %s1 = inlined_call_operand.vmem [shape: f32[8], index: 1, kind: output, shape index: {}]
  $region1: #{custom-call.8} parent=0
    #allocation0 [shape = 's32[1]{0}', space=sflag, size = 0x4, scoped, tag = 'scoped memory for custom-call.8']
    %2 = vsyncpa [#allocation0], 0
    %s4 = sshll.u32 %s0, 4
    %s5 = int_to_ptr.hbm [resolvable:$true] %s4
    %s6 = sshll.u32 %s1, 4
    %s7 = int_to_ptr.vmem [resolvable:$true] %s6
    %9 = dma.hbm_to_vmem [thread:$0]  %s5, 16, %s7, [#allocation0]
    %11 = dma.done [#allocation0], 16
    %12 = vsyncpa [#allocation0], 1

// kernel: neg.7
$region0: #{neg.7}
  #allocation0 [shape = 's32[1]{0}', space=sflag, size = 0x4, scoped, tag = 'scoped memory for neg.7']
  %s0 = inlined_call_operand.vmem [shape: f32[8], index: 0, kind: input, shape index: {}]
  %s1 = inlined_call_operand.vmem [shape: f32[8], index: 1, kind: output, shape index: {}]
  %v2 = vld [vmem:[%s0] sm:$0x1]
  %3 = xla_tuple %v2
  %4 = xla_tuple %3
  %v5 = vxor.u32 %v2, 2147483648
  %6 = xla_tuple %v5
  %7 = vst [vmem:[%s1] sm:$0x1] %v5

// kernel: custom-call.7
$region0: #{custom-call.7}
  %s0 = inlined_call_operand.hbm [shape: c64[1,1,8], index: 0, kind: input, shape index: {}]
  %s1 = inlined_call_operand.vmem [shape: f32[1,1,8], index: 1, kind: output, shape index: {}]
  %s2 = scalar_lea.hbm %s0, 1
  $region1: #{custom-call.7} parent=0
    #allocation0 [shape = 's32[1]{0}', space=sflag, size = 0x4, scoped, tag = 'scoped memory for custom-call.7']
    %3 = vsyncpa [#allocation0], 0
    %s5 = sshll.u32 %s2, 4
    %s6 = int_to_ptr.hbm [resolvable:$true] %s5
    %s7 = sshll.u32 %s1, 4
    %s8 = int_to_ptr.vmem [resolvable:$true] %s7
    %10 = dma.hbm_to_vmem [thread:$0]  %s6, 16, %s8, [#allocation0]
    %12 = dma.done [#allocation0], 16
    %13 = vsyncpa [#allocation0], 1

// kernel: custom-call.6
$region0: #{custom-call.6}
  %s0 = inlined_call_operand.hbm [shape: c64[1,1,8], index: 0, kind: input, shape index: {}]
  %s1 = inlined_call_operand.vmem [shape: f32[1,1,8], index: 1, kind: output, shape index: {}]
  $region1: #{custom-call.6} parent=0
    #allocation0 [shape = 's32[1]{0}', space=sflag, size = 0x4, scoped, tag = 'scoped memory for custom-call.6']
    %2 = vsyncpa [#allocation0], 0
    %s4 = sshll.u32 %s0, 4
    %s5 = int_to_ptr.hbm [resolvable:$true] %s4
    %s6 = sshll.u32 %s1, 4
    %s7 = int_to_ptr.vmem [resolvable:$true] %s6
    %9 = dma.hbm_to_vmem [thread:$0]  %s5, 16, %s7, [#allocation0]
    %11 = dma.done [#allocation0], 16
    %12 = vsyncpa [#allocation0], 1

// kernel: custom-call.1
$region0: #{custom-call.1}
  %s0 = inlined_call_operand.hbm [shape: c64[16], index: 0, kind: input, shape index: {}]
  %s1 = inlined_call_operand.vmem [shape: f32[16], index: 1, kind: output, shape index: {}]
  %s2 = scalar_lea.hbm %s0, 1
  $region1: #{custom-call.1} parent=0
    #allocation0 [shape = 's32[1]{0}', space=sflag, size = 0x4, scoped, tag = 'scoped memory for custom-call.1']
    %3 = vsyncpa [#allocation0], 0
    %s5 = sshll.u32 %s2, 4
    %s6 = int_to_ptr.hbm [resolvable:$true] %s5
    %s7 = sshll.u32 %s1, 4
    %s8 = int_to_ptr.vmem [resolvable:$true] %s7
    %10 = dma.hbm_to_vmem [thread:$0]  %s6, 16, %s8, [#allocation0]
    %12 = dma.done [#allocation0], 16
    %13 = vsyncpa [#allocation0], 1

// kernel: custom-call
$region0: #{custom-call}
  %s0 = inlined_call_operand.hbm [shape: c64[16], index: 0, kind: input, shape index: {}]
  %s1 = inlined_call_operand.vmem [shape: f32[16], index: 1, kind: output, shape index: {}]
  $region1: #{custom-call} parent=0
    #allocation0 [shape = 's32[1]{0}', space=sflag, size = 0x4, scoped, tag = 'scoped memory for custom-call']
    %2 = vsyncpa [#allocation0], 0
    %s4 = sshll.u32 %s0, 4
    %s5 = int_to_ptr.hbm [resolvable:$true] %s4
    %s6 = sshll.u32 %s1, 4
    %s7 = int_to_ptr.vmem [resolvable:$true] %s6
    %9 = dma.hbm_to_vmem [thread:$0]  %s5, 16, %s7, [#allocation0]
    %11 = dma.done [#allocation0], 16
    %12 = vsyncpa [#allocation0], 1

// kernel: s4nd_forward.1
$region0: #{s4nd_forward.1}
  #allocation0 [shape = 'u32[]', space=smem, size = 0x4, offset = 0x4, fixed_abs, tag = 'smem constant byte address 0x4 - core index']
  #allocation1 [shape = 'u32[72,128]{1,0:T(1,128)}', space=vmem, size = 0x9000, scoped, tag = 'internal scratch']
  %s0 = inlined_call_operand.vmem [shape: f32[2,16,64], index: 0, kind: input, shape index: {}]
  %s1 = inlined_call_operand.vmem [shape: f32[64,64], index: 1, kind: input, shape index: {}]
  %s2 = inlined_call_operand.vmem [shape: f32[4,16,16], index: 2, kind: input, shape index: {}]
  %s3 = inlined_call_operand.vmem [shape: f32[4,1,64], index: 3, kind: input, shape index: {}]
  %s4 = inlined_call_operand.vmem [shape: f32[1,64], index: 4, kind: input, shape index: {}]
  %s5 = inlined_call_operand.vmem [shape: f32[2,16,64], index: 5, kind: output, shape index: {}]
  %s6 = sld [smem:[#allocation0]]
  $region53: #{s4nd_forward.1} parent=0
    _
  %s8 = ssub.s32 1, %s6
  %s9 = scalar_select 0, %s8, %s6
  loop: start=0, step=1, limit=4
  $region2: #{s4nd_forward.1} parent=0 // loop_pre_header
    _
  $region3: #{s4nd_forward.1} parent=0 // loop_header
    %s11 = sphi 0, %s15
    %p12 = scmp.ge.s32.totalorder %s11, 4
    %s21 = sphi 0, %s23
    %s24 = sphi 0, %s21
    %s25 = sphi 0, %s24
    %s41 = sphi 0, %s25
    %s45 = sphi 0, %s45
    %s47 = sphi 0, %s45
    %s48 = sphi 0, %s47
    %s62 = sphi 0, %s48
    %s66 = sphi 0, %s66
    %s68 = sphi 0, %s66
    %s69 = sphi 0, %s68
    %s83 = sphi 0, %s69
    %s87 = sphi 0, %s87
    %s89 = sphi 0, %s87
    %s90 = sphi 0, %s89
    %s104 = sphi 0, %s90
    %s108 = sphi 0, %s108
    %s110 = sphi 0, %s108
    %s111 = sphi 0, %s110
    %s125 = sphi 0, %s111
    %s131 = sphi 0, %s133
    %s134 = sphi 0, %s131
    %s135 = sphi 0, %s134
    %s151 = sphi 0, %s135
  $region4: #{s4nd_forward.1} parent=0 // loop_header_branch
    %14 = sbr.rel (%p12) target = $region8
  $region5: #{s4nd_forward.1} parent=0 // loop_body
    %s16 = ssub.s32 %s11, 1
    %s17 = ssub.s32 %s11, 2
    %s18 = sadd.s32 %s11, 1
    %s19 = ssub.s32 %s11, %s18
    %p20 = scmp.eq.s32.totalorder %s19, 0
    %s22 = sadd.s32 %s21, 1
    %s23 = scalar_select %p20, %s21, %s22
    %p26 = pneg %p20
    %p27 = scmp.eq.s32.totalorder %s11, 1
    %p28 = por %p26, %p27
    %p29 = scmp.ne.s32.totalorder %s21, %s24
    %p30 = scmp.eq.s32.totalorder %s11, 0
    %p31 = por %p29, %p30
    %p32 = scmp.ne.s32.totalorder %s21, %s24
    %p33 = scmp.eq.s32.totalorder %s16, 1
    %p34 = por %p32, %p33
    %p35 = scmp.ne.s32.totalorder %s24, %s25
    %p36 = scmp.eq.s32.totalorder %s16, 0
    %p37 = por %p35, %p36
    %p38 = scmp.ne.s32.totalorder %s24, %s25
    %p39 = scmp.eq.s32.totalorder %s17, 1
    %p40 = por %p38, %p39
    %p42 = scmp.ne.s32.totalorder %s25, %s41
    %p43 = scmp.eq.s32.totalorder %s17, 0
    %p44 = por %p42, %p43
    %s46 = sadd.s32 %s45, 1
    %p49 = scmp.eq.s32.totalorder %s11, 1
    %p50 = scmp.ne.s32.totalorder %s45, %s47
    %p51 = scmp.eq.s32.totalorder %s11, 0
    %p52 = por %p50, %p51
    %p53 = scmp.ne.s32.totalorder %s45, %s47
    %p54 = scmp.eq.s32.totalorder %s16, 1
    %p55 = por %p53, %p54
    %p56 = scmp.ne.s32.totalorder %s47, %s48
    %p57 = scmp.eq.s32.totalorder %s16, 0
    %p58 = por %p56, %p57
    %p59 = scmp.ne.s32.totalorder %s47, %s48
    %p60 = scmp.eq.s32.totalorder %s17, 1
    %p61 = por %p59, %p60
    %p63 = scmp.ne.s32.totalorder %s48, %s62
    %p64 = scmp.eq.s32.totalorder %s17, 0
    %p65 = por %p63, %p64
    %s67 = sadd.s32 %s66, 1
    %p70 = scmp.eq.s32.totalorder %s11, 1
    %p71 = scmp.ne.s32.totalorder %s66, %s68
    %p72 = scmp.eq.s32.totalorder %s11, 0
    %p73 = por %p71, %p72
    %p74 = scmp.ne.s32.totalorder %s66, %s68
    %p75 = scmp.eq.s32.totalorder %s16, 1
    %p76 = por %p74, %p75
    %p77 = scmp.ne.s32.totalorder %s68, %s69
    %p78 = scmp.eq.s32.totalorder %s16, 0
    %p79 = por %p77, %p78
    %p80 = scmp.ne.s32.totalorder %s68, %s69
    %p81 = scmp.eq.s32.totalorder %s17, 1
    %p82 = por %p80, %p81
    %p84 = scmp.ne.s32.totalorder %s69, %s83
    %p85 = scmp.eq.s32.totalorder %s17, 0
    %p86 = por %p84, %p85
    %s88 = sadd.s32 %s87, 1
    %p91 = scmp.eq.s32.totalorder %s11, 1
    %p92 = scmp.ne.s32.totalorder %s87, %s89
    %p93 = scmp.eq.s32.totalorder %s11, 0
    %p94 = por %p92, %p93
    %p95 = scmp.ne.s32.totalorder %s87, %s89
    %p96 = scmp.eq.s32.totalorder %s16, 1
    %p97 = por %p95, %p96
    %p98 = scmp.ne.s32.totalorder %s89, %s90
    %p99 = scmp.eq.s32.totalorder %s16, 0
    %p100 = por %p98, %p99
    %p101 = scmp.ne.s32.totalorder %s89, %s90
    %p102 = scmp.eq.s32.totalorder %s17, 1
    %p103 = por %p101, %p102
    %p105 = scmp.ne.s32.totalorder %s90, %s104
    %p106 = scmp.eq.s32.totalorder %s17, 0
    %p107 = por %p105, %p106
    %s109 = sadd.s32 %s108, 1
    %p112 = scmp.eq.s32.totalorder %s11, 1
    %p113 = scmp.ne.s32.totalorder %s108, %s110
    %p114 = scmp.eq.s32.totalorder %s11, 0
    %p115 = por %p113, %p114
    %p116 = scmp.ne.s32.totalorder %s108, %s110
    %p117 = scmp.eq.s32.totalorder %s16, 1
    %p118 = por %p116, %p117
    %p119 = scmp.ne.s32.totalorder %s110, %s111
    %p120 = scmp.eq.s32.totalorder %s16, 0
    %p121 = por %p119, %p120
    %p122 = scmp.ne.s32.totalorder %s110, %s111
    %p123 = scmp.eq.s32.totalorder %s17, 1
    %p124 = por %p122, %p123
    %p126 = scmp.ne.s32.totalorder %s111, %s125
    %p127 = scmp.eq.s32.totalorder %s17, 0
    %p128 = por %p126, %p127
    %s129 = ssub.s32 %s11, %s18
    %p130 = scmp.eq.s32.totalorder %s129, 0
    %s132 = sadd.s32 %s131, 1
    %s133 = scalar_select %p130, %s131, %s132
    %p136 = pneg %p130
    %p137 = scmp.eq.s32.totalorder %s11, 1
    %p138 = por %p136, %p137
    %p139 = scmp.ne.s32.totalorder %s131, %s134
    %p140 = scmp.eq.s32.totalorder %s11, 0
    %p141 = por %p139, %p140
    %p142 = scmp.ne.s32.totalorder %s131, %s134
    %p143 = scmp.eq.s32.totalorder %s16, 1
    %p144 = por %p142, %p143
    %p145 = scmp.ne.s32.totalorder %s134, %s135
    %p146 = scmp.eq.s32.totalorder %s16, 0
    %p147 = por %p145, %p146
    %p148 = scmp.ne.s32.totalorder %s134, %s135
    %p149 = scmp.eq.s32.totalorder %s17, 1
    %p150 = por %p148, %p149
    %p152 = scmp.ne.s32.totalorder %s135, %s151
    %p153 = scmp.eq.s32.totalorder %s17, 0
    %p154 = por %p152, %p153
    %p155 = scmp.le.s32.totalorder 1, %s11
    %p156 = scmp.lt.s32.totalorder %s11, 3
    %p157 = pnand %p155, %p156
    %p158 = pneg %p157
    // Predicated region
    $region9: #{s4nd_forward.1} parent=5 // pred_check
      _
    $region10: #{s4nd_forward.1} parent=5 // pred_check_branch
      %160 = sbr.rel (%p157) target = $region12
    $region11: #{s4nd_forward.1} parent=5 // pred_region
      %s161 = ssub.s32 %s11, 1
      // Predicated region
      $region13: #{s4nd_forward.1} parent=11 // pred_check
        %p162 = pneg %p58
      $region14: #{s4nd_forward.1} parent=11 // pred_check_branch
        %164 = sbr.rel (%p162) target = $region16
      $region15: #{s4nd_forward.1} parent=11 // pred_region
        _
      $region16: #{s4nd_forward.1} parent=11 // pred_fallthru
        _
      // Predicated region
      $region17: #{s4nd_forward.1} parent=11 // pred_check
        %p165 = pneg %p79
      $region18: #{s4nd_forward.1} parent=11 // pred_check_branch
        %167 = sbr.rel (%p165) target = $region20
      $region19: #{s4nd_forward.1} parent=11 // pred_region
        _
      $region20: #{s4nd_forward.1} parent=11 // pred_fallthru
        _
      // Predicated region
      $region21: #{s4nd_forward.1} parent=11 // pred_check
        %p168 = pneg %p100
      $region22: #{s4nd_forward.1} parent=11 // pred_check_branch
        %170 = sbr.rel (%p168) target = $region24
      $region23: #{s4nd_forward.1} parent=11 // pred_region
        _
      $region24: #{s4nd_forward.1} parent=11 // pred_fallthru
        _
      // Predicated region
      $region25: #{s4nd_forward.1} parent=11 // pred_check
        %p171 = pneg %p121
      $region26: #{s4nd_forward.1} parent=11 // pred_check_branch
        %173 = sbr.rel (%p171) target = $region28
      $region27: #{s4nd_forward.1} parent=11 // pred_region
        _
      $region28: #{s4nd_forward.1} parent=11 // pred_fallthru
        _
    $region12: #{s4nd_forward.1} parent=5 // pred_fallthru
      _
    %p174 = scmp.lt.s32.totalorder %s11, 2
    // Predicated region
    $region29: #{s4nd_forward.1} parent=5 // pred_check
      %p175 = pneg %p174
    $region30: #{s4nd_forward.1} parent=5 // pred_check_branch
      %177 = sbr.rel (%p175) target = $region32
    $region31: #{s4nd_forward.1} parent=5 // pred_region
      // Predicated region
      $region33: #{s4nd_forward.1} parent=31 // pred_check
        %p178 = pneg %p31
      $region34: #{s4nd_forward.1} parent=31 // pred_check_branch
        %180 = sbr.rel (%p178) target = $region36
      $region35: #{s4nd_forward.1} parent=31 // pred_region
        %p181 = scmp.lt.s32.totalorder %s11, 1
        %s182 = scalar_select %p181, %s11, 1
        %s183 = smul.addr %s182, 2
        %s184 = smul.addr %s183, 8
        %s185 = scalar_lea.vmem %s0, %s184
      $region36: #{s4nd_forward.1} parent=31 // pred_fallthru
        _
    $region32: #{s4nd_forward.1} parent=5 // pred_fallthru
      _
    %p186 = scmp.le.s32.totalorder 1, %s11
    %p187 = scmp.lt.s32.totalorder %s11, 3
    %p188 = pnand %p186, %p187
    %p189 = pneg %p188
    // Predicated region
    $region37: #{s4nd_forward.1} parent=5 // pred_check
      _
    $region38: #{s4nd_forward.1} parent=5 // pred_check_branch
      %191 = sbr.rel (%p188) target = $region40
    $region39: #{s4nd_forward.1} parent=5 // pred_region
      %s192 = ssub.s32 %s11, 1
      %p193 = scmp.lt.s32.totalorder %s16, 1
      %s194 = scalar_select %p193, %s16, 1
      %s195 = smul.addr %s194, 2
      %s196 = smul.addr %s195, 8
      %s197 = scalar_lea.vmem %s0, %s196
      %p198 = pneg %p37
      %p199 = pneg %p34
      %p200 = pneg %p58
      %p201 = pneg %p55
      %p202 = pneg %p79
      %p203 = pneg %p76
      %p204 = pneg %p100
      %p205 = pneg %p97
      %p206 = pneg %p121
      %p207 = pneg %p118
      %p208 = pneg %p147
      %p209 = pneg %p144
      %p210 = scmp.lt.s32.totalorder %s16, 1
      %s211 = scalar_select %p210, %s16, 1
      %s212 = smul.addr %s211, 2
      %s213 = smul.addr %s212, 8
      %s214 = scalar_lea.vmem %s5, %s213
      %p215 = scmp.lt.s32.totalorder %s16, 1
      %s216 = scalar_select %p215, %s16, 1
      %s217 = smul.addr %s216, 2
      %s218 = smul.addr %s217, 8
      %s219 = scalar_lea.vmem %s0, %s218
      %p220 = scmp.lt.s32.totalorder %s16, 1
      %s221 = scalar_select %p220, %s16, 1
      %s222 = smul.addr %s221, 2
      %s223 = smul.addr %s222, 8
      %s224 = scalar_lea.vmem %s5, %s223
      %v225 = vld [vmem:[%s219] sm:$0xff]
      %v226 = vld [vmem:[%s219 + $0x8] sm:$0xff]
      %v227 = vld [vmem:[%s1] sm:$0xff]
      %v228 = vld [vmem:[%s1 + $0x8] sm:$0xff]
      %v229 = vld [vmem:[%s1 + $0x10] sm:$0xff]
      %v230 = vld [vmem:[%s1 + $0x18] sm:$0xff]
      %v231 = vld [vmem:[%s1 + $0x20] sm:$0xff]
      %v232 = vld [vmem:[%s1 + $0x28] sm:$0xff]
      %v233 = vld [vmem:[%s1 + $0x30] sm:$0xff]
      %v234 = vld [vmem:[%s1 + $0x38] sm:$0xff]
      %vm235 = vcmask 523264
      %v237 = vsel %vm235, %v225, 0
      %v240 = vsel %vm235, %v226, 0
      %242 = vmatpush.msra.mxu0 0.0
      %243 = vmatpush.msra.mxu0 0.0
      %244 = vmatpush.msra.mxu0 0.0
      %245 = vmatpush.msra.mxu0 0.0
      %246 = vmatpush.msra.mxu0 0.0
      %247 = vmatpush.msra.mxu0 0.0
      %248 = vmatpush.msra.mxu0 0.0
      %249 = vmatpush.msra.mxu0 0.0
      %250 = vmatpush.msra.mxu0 %v234
      %251 = vmatpush.msra.mxu0 %v233
      %252 = vmatpush.msra.mxu0 %v232
      %253 = vmatpush.msra.mxu0 %v231
      %254 = vmatpush.msra.mxu0 %v230
      %255 = vmatpush.msra.mxu0 %v229
      %256 = vmatpush.msra.mxu0 %v228
      %257 = vmatpush.msra.mxu0 %v227
      %258 = vmatmul.f32.gmra.mxu0 %v237
      %v259 = vpop.f32.mrf.mxu0
      %v260 = vadd.f32 0.0, %v259
      %261 = vmatmul.f32.gmra.mxu0 %v240
      %v262 = vpop.f32.mrf.mxu0
      %v263 = vadd.f32 0.0, %v262
      %264 = vdwg.mxu0
      %v265 = vld [vmem:[%s4] sm:$0x1]
      %v267 = vperm.slane %v265, 0
      %v269 = vmul.f32 %v267, %v225
      %v270 = vmul.f32 %v267, %v226
      %v271 = vld [vmem:[%s2] sm:$0xff]
      %v272 = vld [vmem:[%s2 + $0x8] sm:$0xff]
      %vm273 = vcmask 130048
      %v275 = vsel %vm273, %v271, 0
      %v278 = vsel %vm273, %v272, 0
      %280 = vmatpush.msra.mxu0 0.0
      %281 = vmatpush.msra.mxu0 0.0
      %282 = vmatpush.msra.mxu0 0.0
      %283 = vmatpush.msra.mxu0 0.0
      %284 = vmatpush.msra.mxu0 0.0
      %285 = vmatpush.msra.mxu0 0.0
      %286 = vmatpush.msra.mxu0 0.0
      %287 = vmatpush.msra.mxu0 0.0
      %288 = vmatpush.msra.mxu0 0.0
      %289 = vmatpush.msra.mxu0 0.0
      %290 = vmatpush.msra.mxu0 0.0
      %291 = vmatpush.msra.mxu0 0.0
      %292 = vmatpush.msra.mxu0 0.0
      %293 = vmatpush.msra.mxu0 0.0
      %294 = vmatpush.msra.mxu0 %v263
      %295 = vmatpush.msra.mxu0 %v260
      %296 = vmatmul.f32.gmra.mxu0 %v275
      %v297 = vpop.f32.mrf.mxu0
      %v298 = vadd.f32 0.0, %v297
      %299 = vmatmul.f32.gmra.mxu0 %v278
      %v300 = vpop.f32.mrf.mxu0
      %v301 = vadd.f32 0.0, %v300
      %302 = vdwg.mxu0
      %v303 = vld [vmem:[%s3] sm:$0x1]
      %v305 = vperm.slane %v303, 0
      %v307 = vmul.f32 %v298, %v305
      %v308 = vmul.f32 %v301, %v305
      %v309 = vadd.f32 %v269, %v307
      %v310 = vadd.f32 %v270, %v308
      %s311 = scalar_lea.vmem %s2, 16
      %v312 = vld [vmem:[%s311] sm:$0xff]
      %v313 = vld [vmem:[%s311 + $0x8] sm:$0xff]
      %v315 = vsel %vm273, %v312, 0
      %v318 = vsel %vm273, %v313, 0
      %320 = vmatpush.msra.mxu0 0.0
      %321 = vmatpush.msra.mxu0 0.0
      %322 = vmatpush.msra.mxu0 0.0
      %323 = vmatpush.msra.mxu0 0.0
      %324 = vmatpush.msra.mxu0 0.0
      %325 = vmatpush.msra.mxu0 0.0
      %326 = vmatpush.msra.mxu0 0.0
      %327 = vmatpush.msra.mxu0 0.0
      %328 = vmatpush.msra.mxu0 0.0
      %329 = vmatpush.msra.mxu0 0.0
      %330 = vmatpush.msra.mxu0 0.0
      %331 = vmatpush.msra.mxu0 0.0
      %332 = vmatpush.msra.mxu0 0.0
      %333 = vmatpush.msra.mxu0 0.0
      %334 = vmatpush.msra.mxu0 %v263
      %335 = vmatpush.msra.mxu0 %v260
      %336 = vmatmul.f32.gmra.mxu0 %v315
      %v337 = vpop.f32.mrf.mxu0
      %v338 = vadd.f32 0.0, %v337
      %339 = vmatmul.f32.gmra.mxu0 %v318
      %v340 = vpop.f32.mrf.mxu0
      %v341 = vadd.f32 0.0, %v340
      %342 = vdwg.mxu0
      %s343 = scalar_lea.vmem %s3, 1
      %v344 = vld [vmem:[%s343] sm:$0x1]
      %v346 = vperm.slane %v344, 0
      %v348 = vmul.f32 %v338, %v346
      %v349 = vmul.f32 %v341, %v346
      %v350 = vadd.f32 %v309, %v348
      %v351 = vadd.f32 %v310, %v349
      %s352 = scalar_lea.vmem %s2, 32
      %v353 = vld [vmem:[%s352] sm:$0xff]
      %v354 = vld [vmem:[%s352 + $0x8] sm:$0xff]
      %v356 = vsel %vm273, %v353, 0
      %v359 = vsel %vm273, %v354, 0
      %361 = vmatpush.msra.mxu0 0.0
      %362 = vmatpush.msra.mxu0 0.0
      %363 = vmatpush.msra.mxu0 0.0
      %364 = vmatpush.msra.mxu0 0.0
      %365 = vmatpush.msra.mxu0 0.0
      %366 = vmatpush.msra.mxu0 0.0
      %367 = vmatpush.msra.mxu0 0.0
      %368 = vmatpush.msra.mxu0 0.0
      %369 = vmatpush.msra.mxu0 0.0
      %370 = vmatpush.msra.mxu0 0.0
      %371 = vmatpush.msra.mxu0 0.0
      %372 = vmatpush.msra.mxu0 0.0
      %373 = vmatpush.msra.mxu0 0.0
      %374 = vmatpush.msra.mxu0 0.0
      %375 = vmatpush.msra.mxu0 %v263
      %376 = vmatpush.msra.mxu0 %v260
      %377 = vmatmul.f32.gmra.mxu0 %v356
      %v378 = vpop.f32.mrf.mxu0
      %v379 = vadd.f32 0.0, %v378
      %380 = vmatmul.f32.gmra.mxu0 %v359
      %v381 = vpop.f32.mrf.mxu0
      %v382 = vadd.f32 0.0, %v381
      %383 = vdwg.mxu0
      %s384 = scalar_lea.vmem %s3, 2
      %v385 = vld [vmem:[%s384] sm:$0x1]
      %v387 = vperm.slane %v385, 0
      %v389 = vmul.f32 %v379, %v387
      %v390 = vmul.f32 %v382, %v387
      %v391 = vadd.f32 %v350, %v389
      %v392 = vadd.f32 %v351, %v390
      %s393 = scalar_lea.vmem %s2, 48
      %v394 = vld [vmem:[%s393] sm:$0xff]
      %v395 = vld [vmem:[%s393 + $0x8] sm:$0xff]
      %v397 = vsel %vm273, %v394, 0
      %v400 = vsel %vm273, %v395, 0
      %402 = vmatpush.msra.mxu0 0.0
      %403 = vmatpush.msra.mxu0 0.0
      %404 = vmatpush.msra.mxu0 0.0
      %405 = vmatpush.msra.mxu0 0.0
      %406 = vmatpush.msra.mxu0 0.0
      %407 = vmatpush.msra.mxu0 0.0
      %408 = vmatpush.msra.mxu0 0.0
      %409 = vmatpush.msra.mxu0 0.0
      %410 = vmatpush.msra.mxu0 0.0
      %411 = vmatpush.msra.mxu0 0.0
      %412 = vmatpush.msra.mxu0 0.0
      %413 = vmatpush.msra.mxu0 0.0
      %414 = vmatpush.msra.mxu0 0.0
      %415 = vmatpush.msra.mxu0 0.0
      %416 = vmatpush.msra.mxu0 %v263
      %417 = vmatpush.msra.mxu0 %v260
      %418 = vmatmul.f32.gmra.mxu0 %v397
      %v419 = vpop.f32.mrf.mxu0
      %v420 = vadd.f32 0.0, %v419
      %421 = vmatmul.f32.gmra.mxu0 %v400
      %v422 = vpop.f32.mrf.mxu0
      %v423 = vadd.f32 0.0, %v422
      %424 = vdwg.mxu0
      %s425 = scalar_lea.vmem %s3, 3
      %v426 = vld [vmem:[%s425] sm:$0x1]
      %v428 = vperm.slane %v426, 0
      %v430 = vmul.f32 %v420, %v428
      %v431 = vmul.f32 %v423, %v428
      %v432 = vadd.f32 %v391, %v430
      %v433 = vadd.f32 %v392, %v431
      %434 = vst.msk [vmem:[%s224] sm:$0xff] %vm235, %v432
      %435 = vst.msk [vmem:[%s224 + $0x8] sm:$0xff] %vm235, %v433
      %p436 = scmp.lt.s32.totalorder %s16, 1
      %s437 = scalar_select %p436, %s16, 1
      %s438 = smul.addr %s437, 2
      %s439 = smul.addr %s438, 8
      %s440 = scalar_lea.vmem %s5, %s439
      // Predicated region
      $region41: #{s4nd_forward.1} parent=39 // pred_check
        %p441 = pneg %p144
      $region42: #{s4nd_forward.1} parent=39 // pred_check_branch
        %443 = sbr.rel (%p441) target = $region44
      $region43: #{s4nd_forward.1} parent=39 // pred_region
        _
      $region44: #{s4nd_forward.1} parent=39 // pred_fallthru
        _
    $region40: #{s4nd_forward.1} parent=5 // pred_fallthru
      _
    %p444 = scmp.le.s32.totalorder 2, %s11
    // Predicated region
    $region45: #{s4nd_forward.1} parent=5 // pred_check
      %p445 = pneg %p444
    $region46: #{s4nd_forward.1} parent=5 // pred_check_branch
      %447 = sbr.rel (%p445) target = $region48
    $region47: #{s4nd_forward.1} parent=5 // pred_region
      %s448 = ssub.s32 %s11, 2
      // Predicated region
      $region49: #{s4nd_forward.1} parent=47 // pred_check
        %p449 = pneg %p150
      $region50: #{s4nd_forward.1} parent=47 // pred_check_branch
        %451 = sbr.rel (%p449) target = $region52
      $region51: #{s4nd_forward.1} parent=47 // pred_region
        %p452 = scmp.lt.s32.totalorder %s17, 1
        %s453 = scalar_select %p452, %s17, 1
        %s454 = smul.addr %s453, 2
        %s455 = smul.addr %s454, 8
        %s456 = scalar_lea.vmem %s5, %s455
      $region52: #{s4nd_forward.1} parent=47 // pred_fallthru
        _
    $region48: #{s4nd_forward.1} parent=5 // pred_fallthru
      _
  $region6: #{s4nd_forward.1} parent=0 // loop_footer
    %s15 = sadd.s32 1, %s11
  $region7: #{s4nd_forward.1} parent=0 // loop_footer_branch
    %10 = sbr.rel target = $region3
  $region8: #{s4nd_forward.1} parent=0 // loop_exit
    _

</llo_original>
